<compile_context>
chip_gen: v7x
topology: tpu7x:2x2x1
jax: 0.10.0
libtpu: 0.0.40
codegen_flags: <defaults>
</compile_context>

<pallas_src>
import functools

import jax
import jax.numpy as jnp
from jax.experimental import pallas as pl
from jax.experimental.pallas import tpu as pltpu

_LANE = 128
_CHUNK_ROWS = 1024          # rows of a block reduced per inner step
_NEG_HUNDRED = -100.0       # torch.nn.BCELoss clamps log terms at -100


def _round_up(a, b):
    return (a + b - 1) // b * b


def _default_num_cores():
    """2 on multi-TensorCore chips (v7x); 1 on v5e / v6e."""
    try:
        kind = jax.devices()[0].device_kind.lower()
    except Exception:
        return 1
    return 2 if "v7" in kind else 1


def _bce_sum_kernel(out_ref, tgt_ref, partial_ref, *, tile_rows, chunk_rows,
                    lane, valid_rows, steps_per_core, nblocks, has_partial,
                    has_oob):
    """Accumulates an (8, lane) partial BCE sum per parallel core."""
    p = pl.program_id(0)          # parallel axis (megacore split on v7x)
    k = pl.program_id(1)          # sequential reduction axis

    @pl.when(k == 0)
    def _():
        partial_ref[...] = jnp.zeros_like(partial_ref)

    block_id = p * steps_per_core + k

    def accumulate(masked):
        # Walk the (tile_rows, lane) block in chunk_rows slices so the
        # element-wise intermediates stay small (<~2 MiB) regardless of how
        # large the streaming block is.
        for c in range(tile_rows // chunk_rows):
            r0 = c * chunk_rows
            x = out_ref[r0:r0 + chunk_rows, :].astype(jnp.float32)
            y = tgt_ref[r0:r0 + chunk_rows, :].astype(jnp.float32)
            log_x = jnp.maximum(jnp.log(x), jnp.float32(_NEG_HUNDRED))
            log_1mx = jnp.maximum(jnp.log(1.0 - x), jnp.float32(_NEG_HUNDRED))
            elem = -(y * log_x + (1.0 - y) * log_1mx)
            if masked:
                # Rows past the end of the slab read garbage (possibly NaN
                # after log); keep the select form so they are discarded.
                row_ids = (block_id * tile_rows + r0
                           + jax.lax.broadcasted_iota(jnp.int32, elem.shape, 0))
                elem = jnp.where(row_ids < valid_rows, elem, jnp.float32(0.0))
            # (chunk, lane) -> (chunk//8, 8, lane) summed over the leading
            # axis: pure VALU vreg adds into a single-vreg partial.
            partial_ref[...] += jnp.sum(
                elem.reshape(chunk_rows // 8, 8, lane), axis=0)

    if not has_partial and not has_oob:
        accumulate(masked=False)          # fast path: every block fully valid
    else:
        full_blocks = nblocks - 1 if has_partial else nblocks

        @pl.when(block_id < full_blocks)
        def _():
            accumulate(masked=False)

        if has_partial:
            @pl.when(block_id == nblocks - 1)
            def _():
                accumulate(masked=True)
        # block_id >= nblocks (clamped duplicates from the core split) are
        # skipped entirely: no compute, no accumulation.


def _bce_elementwise(x, y):
    x = x.astype(jnp.float32)
    y = y.astype(jnp.float32)
    log_x = jnp.maximum(jnp.log(x), jnp.float32(_NEG_HUNDRED))
    log_1mx = jnp.maximum(jnp.log(1.0 - x), jnp.float32(_NEG_HUNDRED))
    return -(y * log_x + (1.0 - y) * log_1mx)


def bce_loss(output, target, *, tile_rows=None, num_cores=None):
    """torch.nn.BCELoss(reduction='mean') over matching output/target arrays."""
    assert output.shape == target.shape, (output.shape, target.shape)
    n = int(output.size)
    assert n > 0, "BCELoss of an empty tensor is undefined"

    flat_o = output.reshape(-1)           # native dtype; f32 cast is in-kernel
    flat_t = target.reshape(-1)

    rows = n // _LANE
    rem = n - rows * _LANE

    # <128-element lane remainder: summed with plain XLA ops (tiny) instead of
    # jnp.pad-ing (and re-reading) the whole slab.
    tail_sum = jnp.float32(0.0)
    if rem > 0:
        tail_sum = jnp.sum(_bce_elementwise(flat_o[rows * _LANE:],
                                            flat_t[rows * _LANE:]))
    if rows == 0:
        return tail_sum / jnp.float32(n)

    if rem > 0:
        # Offset-0 contiguous prefix; a no-op when n % 128 == 0 (common case).
        flat_o = flat_o[: rows * _LANE]
        flat_t = flat_t[: rows * _LANE]
    o2d = flat_o.reshape(rows, _LANE)
    t2d = flat_t.reshape(rows, _LANE)

    # --- Block sizing: ~8 MiB of input per grid step, scaled by dtype. ------
    if tile_rows is None:
        per_row_bytes = _LANE * (o2d.dtype.itemsize + t2d.dtype.itemsize)
        tile_rows = max(_CHUNK_ROWS,
                        ((8 << 20) // per_row_bytes) // _CHUNK_ROWS * _CHUNK_ROWS)
    tile_rows = max(8, _round_up(min(int(tile_rows), _round_up(rows, 8)), 8))
    chunk_rows = _CHUNK_ROWS if tile_rows % _CHUNK_ROWS == 0 else tile_rows

    nblocks = pl.cdiv(rows, tile_rows)
    if num_cores is None:
        num_cores = _default_num_cores()
    n_par = num_cores if nblocks >= num_cores else 1
    steps = pl.cdiv(nblocks, n_par)

    has_partial = (rows % tile_rows) != 0   # last block reads past the slab
    has_oob = (n_par * steps) > nblocks     # clamped duplicate logical blocks
    last_block = nblocks - 1

    def in_index_map(p, k):
        # Clamp fully out-of-range logical blocks onto the last block; their
        # contribution is skipped inside the kernel.
        return (jnp.minimum(p * steps + k, last_block), 0)

    kernel = functools.partial(
        _bce_sum_kernel,
        tile_rows=tile_rows, chunk_rows=chunk_rows, lane=_LANE,
        valid_rows=rows, steps_per_core=steps, nblocks=nblocks,
        has_partial=has_partial, has_oob=has_oob)

    bytes_in = (o2d.size * o2d.dtype.itemsize + t2d.size * t2d.dtype.itemsize)
    cost = pl.CostEstimate(
        flops=8 * rows * _LANE,
        transcendentals=2 * rows * _LANE,     # two log() per element (EUP)
        bytes_accessed=bytes_in + n_par * 8 * _LANE * 4)

    partials = pl.pallas_call(
        kernel,
        out_shape=jax.ShapeDtypeStruct((n_par, 8, _LANE), jnp.float32),
        grid=(n_par, steps),
        in_specs=[
            pl.BlockSpec((tile_rows, _LANE), in_index_map),
            pl.BlockSpec((tile_rows, _LANE), in_index_map),
        ],
        out_specs=pl.BlockSpec((None, 8, _LANE), lambda p, k: (p, 0, 0)),
        compiler_params=pltpu.CompilerParams(
            dimension_semantics=("parallel", "arbitrary"),
            vmem_limit_bytes=32 << 20,
        ),
        cost_estimate=cost,
    )(o2d, t2d)

    # Final tiny cross-lane/core reduction + mean in the wrapper (runs once).
    return (jnp.sum(partials) + tail_sum) / jnp.float32(n)


def bce_loss_reference(output, target):
    return jnp.mean(_bce_elementwise(output, target))


if __name__ == "__main__":
    key = jax.random.PRNGKey(0)

    # (shape, dtype, kwargs) — extra cases exercise the lane-remainder path,
    # partial/masked blocks, the clamped 2-core split and narrow-dtype inputs.
    cases = [
        ((2, 4, 16, 16), jnp.float32, {}),                        # primary NCHW case
        ((3, 5, 7, 11), jnp.float32, {"tile_rows": 8}),            # lane tail + masked block
        ((2, 2, 32, 20), jnp.float32, {"tile_rows": 8, "num_cores": 2}),  # clamped split
        ((2, 4, 16, 16), jnp.bfloat16, {}),                        # narrow-dtype inputs
    ]

    for shape, dtype, kwargs in cases:
        key, k1, k2 = jax.random.split(key, 3)
        logits = jax.random.normal(k1, shape, dtype=jnp.float32)
        output = jax.nn.sigmoid(logits).astype(dtype)              # probs in [0, 1]
        target = (jax.random.uniform(k2, shape) > 0.5).astype(dtype)

        loss = jax.block_until_ready(bce_loss(output, target, **kwargs))
        ref = bce_loss_reference(output, target)
        assert jnp.allclose(loss, ref, rtol=1e-5, atol=1e-6), (shape, dtype, loss, ref)

    print("KERNEL_OK")
</pallas_src>

<mosaic_0001>
module attributes {stable_mosaic.version = 11 : i64} {
  func.func @_bce_sum_kernel(%arg0: i32, %arg1: i32, %arg2: memref<16x128xf32, #tpu.memory_space<vmem>>, %arg3: memref<16x128xf32, #tpu.memory_space<vmem>>, %arg4: memref<1x8x128xf32, #tpu.memory_space<vmem>>) attributes {dimension_semantics = [#tpu.dimension_semantics<parallel>, #tpu.dimension_semantics<arbitrary>], iteration_bounds = array<i64: 1, 1>, scalar_prefetch = 0 : i64, scratch_operands = 0 : i64, tpu.core_type = #tpu.core_type<tc>, window_params = [{transform_indices = @transform_0, window_bounds = array<i64: 16, 128>}, {transform_indices = @transform_1, window_bounds = array<i64: 16, 128>}, {transform_indices = @transform_2, window_bounds = array<i64: 1, 8, 128>}]} {
    %c0_i32 = arith.constant 0 : i32
    %0 = arith.cmpi eq, %arg1, %c0_i32 : i32
    %1 = arith.extui %0 : i1 to i32
    %c0_i32_0 = arith.constant 0 : i32
    %2 = arith.cmpi ne, %1, %c0_i32_0 : i32
    scf.if %2 {
      %cst_15 = arith.constant 0.000000e+00 : f32
      %28 = vector.broadcast %cst_15 : f32 to vector<8x128xf32>
      %c0_16 = arith.constant 0 : index
      %c0_17 = arith.constant 0 : index
      %c0_18 = arith.constant 0 : index
      %29 = vector.load %arg4[%c0_16, %c0_17, %c0_18] : memref<1x8x128xf32, #tpu.memory_space<vmem>>, vector<1x8x128xf32>
      %30 = vector.shape_cast %29 : vector<1x8x128xf32> to vector<8x128xf32>
      %31 = vector.shape_cast %28 : vector<8x128xf32> to vector<1x8x128xf32>
      tpu.vector_store %arg4[%c0_16, %c0_17, %c0_18], %31 {strides = array<i32>} : memref<1x8x128xf32, #tpu.memory_space<vmem>>, vector<1x8x128xf32>,
    } else {
    }
    %c0 = arith.constant 0 : index
    %c0_1 = arith.constant 0 : index
    %3 = vector.load %arg2[%c0, %c0_1] : memref<16x128xf32, #tpu.memory_space<vmem>>, vector<16x128xf32>
    %c0_2 = arith.constant 0 : index
    %c0_3 = arith.constant 0 : index
    %4 = vector.load %arg3[%c0_2, %c0_3] : memref<16x128xf32, #tpu.memory_space<vmem>>, vector<16x128xf32>
    %5 = math.log %3 : vector<16x128xf32>
    %cst = arith.constant -1.000000e+02 : f32
    %6 = vector.broadcast %cst : f32 to vector<16x128xf32>
    %7 = arith.maximumf %5, %6 : vector<16x128xf32>
    %cst_4 = arith.constant 1.000000e+00 : f32
    %8 = vector.broadcast %cst_4 : f32 to vector<16x128xf32>
    %9 = arith.subf %8, %3 : vector<16x128xf32>
    %10 = math.log %9 : vector<16x128xf32>
    %cst_5 = arith.constant -1.000000e+02 : f32
    %11 = vector.broadcast %cst_5 : f32 to vector<16x128xf32>
    %12 = arith.maximumf %10, %11 : vector<16x128xf32>
    %13 = arith.mulf %4, %7 : vector<16x128xf32>
    %cst_6 = arith.constant 1.000000e+00 : f32
    %14 = vector.broadcast %cst_6 : f32 to vector<16x128xf32>
    %15 = arith.subf %14, %4 : vector<16x128xf32>
    %16 = arith.mulf %15, %12 : vector<16x128xf32>
    %17 = arith.addf %13, %16 : vector<16x128xf32>
    %cst_7 = arith.constant 0.000000e+00 : f32
    %18 = vector.broadcast %cst_7 : f32 to vector<16x128xf32>
    %19 = arith.subf %18, %17 : vector<16x128xf32>
    %c0_8 = arith.constant 0 : index
    %c0_9 = arith.constant 0 : index
    %c0_10 = arith.constant 0 : index
    %20 = vector.load %arg4[%c0_8, %c0_9, %c0_10] : memref<1x8x128xf32, #tpu.memory_space<vmem>>, vector<1x8x128xf32>
    %21 = vector.shape_cast %20 : vector<1x8x128xf32> to vector<8x128xf32>
    %22 = vector.shape_cast %19 : vector<16x128xf32> to vector<2x8x128xf32>
    %cst_11 = arith.constant dense<0.000000e+00> : vector<8x128xf32>
    %23 = vector.multi_reduction <add>, %22, %cst_11 [0] : vector<2x8x128xf32> to vector<8x128xf32>
    %24 = arith.addf %21, %23 : vector<8x128xf32>
    %c0_12 = arith.constant 0 : index
    %c0_13 = arith.constant 0 : index
    %c0_14 = arith.constant 0 : index
    %25 = vector.load %arg4[%c0_12, %c0_13, %c0_14] : memref<1x8x128xf32, #tpu.memory_space<vmem>>, vector<1x8x128xf32>
    %26 = vector.shape_cast %25 : vector<1x8x128xf32> to vector<8x128xf32>
    %27 = vector.shape_cast %24 : vector<8x128xf32> to vector<1x8x128xf32>
    tpu.vector_store %arg4[%c0_12, %c0_13, %c0_14], %27 {strides = array<i32>} : memref<1x8x128xf32, #tpu.memory_space<vmem>>, vector<1x8x128xf32>,
    return
  }
  func.func @transform_0(%arg0: i32, %arg1: i32) -> (i32, i32) {
    %c1_i32 = arith.constant 1 : i32
    %0 = arith.muli %arg0, %c1_i32 : i32
    %1 = arith.addi %0, %arg1 : i32
    %c0_i32 = arith.constant 0 : i32
    %2 = arith.minsi %1, %c0_i32 : i32
    %c0_i32_0 = arith.constant 0 : i32
    %c0_i32_1 = arith.constant 0 : i32
    return %2, %c0_i32_0 : i32, i32
  }
  func.func @transform_1(%arg0: i32, %arg1: i32) -> (i32, i32) {
    %c1_i32 = arith.constant 1 : i32
    %0 = arith.muli %arg0, %c1_i32 : i32
    %1 = arith.addi %0, %arg1 : i32
    %c0_i32 = arith.constant 0 : i32
    %2 = arith.minsi %1, %c0_i32 : i32
    %c0_i32_0 = arith.constant 0 : i32
    %c0_i32_1 = arith.constant 0 : i32
    return %2, %c0_i32_0 : i32, i32
  }
  func.func @transform_2(%arg0: i32, %arg1: i32) -> (i32, i32, i32) {
    %c0_i32 = arith.constant 0 : i32
    %c0_i32_0 = arith.constant 0 : i32
    %c0_i32_1 = arith.constant 0 : i32
    return %arg0, %c0_i32, %c0_i32_0 : i32, i32, i32
  }
}

</mosaic_0001>

<llo_original>
// kernel: tpu_custom_call.1
$region0: #{tpu_custom_call.1}
  #allocation0 [shape = 'u32[]', space=smem, size = 0x4, offset = 0x4, fixed_abs, tag = 'smem constant byte address 0x4 - core index']
  #allocation1 [shape = 'u32[144,128]{1,0:T(1,128)}', space=vmem, size = 0x12000, scoped, tag = 'internal scratch']
  %s0 = inlined_call_operand.hbm [shape: f32[16,128], index: 0, kind: input, shape index: {}]
  %s1 = inlined_call_operand.hbm [shape: f32[16,128], index: 1, kind: input, shape index: {}]
  %s2 = inlined_call_operand.hbm [shape: f32[1,8,128], index: 2, kind: output, shape index: {}]
  %s3 = sld [smem:[#allocation0]]
  $region30: #{tpu_custom_call.1} parent=0
    _
  %s5 = ssub.s32 1, %s3
  %s6 = scalar_select 0, %s5, %s3
  $region1: #{tpu_custom_call.1} parent=0
    #allocation2 [shape = 'u8[8192]{0}', space=vmem, size = 0x2000, scoped, tag = 'input window, operand 0, single buffered']
    #allocation3 [shape = 's32[1]{0}', space=sflag, size = 0x4, scoped, tag = 'scoped memory for tpu_custom_call.1']
    #allocation4 [shape = 's32[1]{0}', space=sflag, size = 0x4, scoped, tag = 'scoped memory for tpu_custom_call.1']
    #allocation5 [shape = 'u8[8192]{0}', space=vmem, size = 0x2000, scoped, tag = 'input window, operand 1, single buffered']
    #allocation6 [shape = 's32[1]{0}', space=sflag, size = 0x4, scoped, tag = 'scoped memory for tpu_custom_call.1']
    #allocation7 [shape = 'u8[4096]{0}', space=vmem, size = 0x1000, scoped, tag = 'output window, operand 0, single buffered']
    %7 = vsyncpa [#allocation3], 0
    %8 = vsyncpa [#allocation6], 0
    %9 = vsyncpa [#allocation4], 0
    // Predicated region
    $region2: #{tpu_custom_call.1} parent=1 // pred_check
      _
    $region3: #{tpu_custom_call.1} parent=1 // pred_check_branch
      %11 = sbr.rel (0) target = $region5
    $region4: #{tpu_custom_call.1} parent=1 // pred_region
      %s12 = sadd.s32 0, 0
      %p13 = scmp.lt.s32.totalorder %s12, 0
      %s14 = scalar_select %p13, %s12, 0
      %s15 = smul.u32 2, %s14
      %s17 = ssub.s32 256, 256
      %18 = vsyncadd [#allocation3], %s17
      %s19 = smul.addr %s15, 128
      %s20 = scalar_lea.hbm %s0, %s19
      %s21 = sshll.u32 [#allocation2], 4
      %s22 = int_to_ptr.vmem [resolvable:$true] %s21
      %27 = dma.hbm_to_vmem [thread:$0]  %s20, 256, %s22, [#allocation3], 128, 128, 8
    $region5: #{tpu_custom_call.1} parent=1 // pred_fallthru
      _
    // Predicated region
    $region6: #{tpu_custom_call.1} parent=1 // pred_check
      _
    $region7: #{tpu_custom_call.1} parent=1 // pred_check_branch
      %29 = sbr.rel (0) target = $region9
    $region8: #{tpu_custom_call.1} parent=1 // pred_region
      %s30 = sadd.s32 0, 0
      %p31 = scmp.lt.s32.totalorder %s30, 0
      %s32 = scalar_select %p31, %s30, 0
      %s33 = smul.u32 2, %s32
      %s35 = ssub.s32 256, 256
      %36 = vsyncadd [#allocation6], %s35
      %s37 = smul.addr %s33, 128
      %s38 = scalar_lea.hbm %s1, %s37
      %s39 = sshll.u32 [#allocation5], 4
      %s40 = int_to_ptr.vmem [resolvable:$true] %s39
      %45 = dma.hbm_to_vmem [thread:$0]  %s38, 256, %s40, [#allocation6], 128, 128, 8
    $region9: #{tpu_custom_call.1} parent=1 // pred_fallthru
      _
    // Predicated region
    $region10: #{tpu_custom_call.1} parent=1 // pred_check
      _
    $region11: #{tpu_custom_call.1} parent=1 // pred_check_branch
      %47 = sbr.rel (0) target = $region13
    $region12: #{tpu_custom_call.1} parent=1 // pred_region
      %48 = dma.done [#allocation3], 256
    $region13: #{tpu_custom_call.1} parent=1 // pred_fallthru
      _
    // Predicated region
    $region14: #{tpu_custom_call.1} parent=1 // pred_check
      _
    $region15: #{tpu_custom_call.1} parent=1 // pred_check_branch
      %50 = sbr.rel (0) target = $region17
    $region16: #{tpu_custom_call.1} parent=1 // pred_region
      %51 = dma.done [#allocation6], 256
    $region17: #{tpu_custom_call.1} parent=1 // pred_fallthru
      _
    %s52 = sadd.s32 0, 0
    %p53 = scmp.lt.s32.totalorder %s52, 0
    %s54 = scalar_select %p53, %s52, 0
    %s55 = smul.u32 2, %s54
    %s56 = sadd.s32 0, 0
    %p57 = scmp.lt.s32.totalorder %s56, 0
    %s58 = scalar_select %p57, %s56, 0
    %s59 = smul.u32 2, %s58
    %p60 = scmp.eq.s32.totalorder 0, 0
    // Predicated region
    $region18: #{tpu_custom_call.1} parent=1 // pred_check
      %p61 = pneg %p60
    $region19: #{tpu_custom_call.1} parent=1 // pred_check_branch
      %63 = sbr.rel (%p61) target = $region21
    $region20: #{tpu_custom_call.1} parent=1 // pred_region
      %64 = vst [vmem:[#allocation7] sm:$0xff] 0.0
    $region21: #{tpu_custom_call.1} parent=1 // pred_fallthru
      _
    %v65 = vld [vmem:[#allocation2] sm:$0xff]
    %v66 = vld [vmem:[#allocation2 + $0x8] sm:$0xff]
    %v67 = vld [vmem:[#allocation5] sm:$0xff]
    %v68 = vld [vmem:[#allocation5 + $0x8] sm:$0xff]
    %v69 = vlog2.pop %v65
    %v70 = vmul.f32 %v69, 0.6931472
    %v71 = vlog2.pop %v66
    %v72 = vmul.f32 %v71, 0.6931472
    %v73 = vmax.f32 %v70, -100.0
    %v74 = vmax.f32 %v72, -100.0
    %v75 = vsub.f32 1.0, %v65
    %v76 = vsub.f32 1.0, %v66
    %v77 = vlog2.pop %v75
    %v78 = vmul.f32 %v77, 0.6931472
    %v79 = vlog2.pop %v76
    %v80 = vmul.f32 %v79, 0.6931472
    %v81 = vmax.f32 %v78, -100.0
    %v82 = vmax.f32 %v80, -100.0
    %v83 = vmul.f32 %v67, %v73
    %v84 = vmul.f32 %v68, %v74
    %v85 = vsub.f32 1.0, %v67
    %v86 = vsub.f32 1.0, %v68
    %v87 = vmul.f32 %v85, %v81
    %v88 = vmul.f32 %v86, %v82
    %v89 = vadd.f32 %v83, %v87
    %v90 = vadd.f32 %v84, %v88
    %v91 = vsub.f32 0.0, %v89
    %v92 = vsub.f32 0.0, %v90
    %v93 = vld [vmem:[#allocation7] sm:$0xff]
    %v94 = vadd.f32 %v91, %v92
    %v95 = vadd.f32 %v93, %v94
    %96 = vst [vmem:[#allocation7] sm:$0xff] %v95
    // Predicated region
    $region22: #{tpu_custom_call.1} parent=1 // pred_check
      _
    $region23: #{tpu_custom_call.1} parent=1 // pred_check_branch
      %98 = sbr.rel (0) target = $region25
    $region24: #{tpu_custom_call.1} parent=1 // pred_region
      %s100 = ssub.s32 128, 128
      %101 = vsyncadd [#allocation4], %s100
      %s103 = sshll.u32 [#allocation7], 4
      %s104 = int_to_ptr.vmem [resolvable:$true] %s103
      %106 = dma.vmem_to_hbm [thread:$0]  %s104, 128, %s2, [#allocation4]
    $region25: #{tpu_custom_call.1} parent=1 // pred_fallthru
      _
    // Predicated region
    $region26: #{tpu_custom_call.1} parent=1 // pred_check
      _
    $region27: #{tpu_custom_call.1} parent=1 // pred_check_branch
      %108 = sbr.rel (0) target = $region29
    $region28: #{tpu_custom_call.1} parent=1 // pred_region
      %109 = dma.done [#allocation4], 128
    $region29: #{tpu_custom_call.1} parent=1 // pred_fallthru
      _
    %110 = vsyncpa [#allocation3], 1
    %111 = vsyncpa [#allocation6], 1
    %112 = vsyncpa [#allocation4], 1

</llo_original>
